<compile_context>
chip_gen: v7x
topology: tpu7x:2x2x1
jax: 0.10.0
libtpu: 0.0.40
codegen_flags: <defaults>
</compile_context>

<pallas_src>
import jax
import jax.numpy as jnp
from jax.experimental import pallas as pl
from jax.experimental.pallas import tpu as pltpu


def _round_up(x, m):
    return (x + m - 1) // m * m


def generator_kernel(x_ref, w1_ref, b1_ref, w2_ref, b2_ref, o_ref):
    # Hidden layer: Linear(z_pad -> 256) + LeakyReLU(0.1).
    # x/W1 are bf16; accumulate in f32 on the MXU.
    h = jnp.dot(x_ref[...], w1_ref[...], preferred_element_type=jnp.float32)
    h = h + b1_ref[...]                       # (TB, 256) + (1, 256), f32
    h = jnp.where(h > 0, h, 0.1 * h)          # LeakyReLU(0.1), f32 VPU
    # Output layer: Linear(256 -> img_dim) + Tanh.  Cast h to bf16 for the MXU.
    y = jnp.dot(h.astype(jnp.bfloat16), w2_ref[...],
                preferred_element_type=jnp.float32)
    y = y + b2_ref[...]                       # (TB, img_dim) + (1, img_dim), f32
    o_ref[...] = jnp.tanh(y).astype(o_ref.dtype)   # bf16 store (halves writeback)


def prepare_generator_params(w1, b1, w2, b2):
    """One-time prep: pad z_dim (K of matmul 1) to 128 lanes and cast MXU
    operands to bf16.  Call once; reuse across forward calls."""
    z_dim, hidden = w1.shape
    assert w2.shape[0] == hidden
    img_dim = w2.shape[1]
    k_pad = _round_up(z_dim, 128)
    w1_p = jnp.zeros((k_pad, hidden), jnp.bfloat16).at[:z_dim, :].set(
        w1.astype(jnp.bfloat16))
    b1_p = b1.reshape(1, hidden).astype(jnp.float32)
    w2_p = w2.astype(jnp.bfloat16)                       # (hidden, img_dim)
    b2_p = b2.reshape(1, img_dim).astype(jnp.float32)
    return (w1_p, b1_p, w2_p, b2_p)


def generator_forward(x, params, *, tb=512):
    """Generator forward pass.

    x      : (B, z_dim) f32 noise.
    params : output of prepare_generator_params (pre-padded / pre-cast).
    tb     : batch tile.  On dual-TC v7x pass a tb giving >= 2 grid steps so
             the "parallel" batch axis is sharded across both TensorCores.
    Returns (B, img_dim) bf16 in (-1, 1).
    """
    w1_p, b1_p, w2_p, b2_p = params
    B, z_dim = x.shape
    k_pad, hidden = w1_p.shape
    img_dim = w2_p.shape[1]
    assert z_dim <= k_pad

    # Batch tile: multiple of 8 sublanes, never over-pad tiny batches.
    tb = max(8, min(_round_up(tb, 8), _round_up(B, 8)))
    b_pad = _round_up(B, tb)

    # Per-call prep is just the (small) x: pad batch + K, cast to bf16.
    x_p = jnp.zeros((b_pad, k_pad), jnp.bfloat16).at[:B, :z_dim].set(
        x.astype(jnp.bfloat16))

    grid = (b_pad // tb,)

    cost = pl.CostEstimate(
        flops=2 * b_pad * (k_pad * hidden + hidden * img_dim),
        transcendentals=b_pad * img_dim,               # tanh
        bytes_accessed=(b_pad * k_pad * 2              # x (bf16)
                        + k_pad * hidden * 2 + hidden * 4     # W1 + b1
                        + hidden * img_dim * 2 + img_dim * 4  # W2 + b2
                        + b_pad * img_dim * 2),        # out (bf16)
    )

    out = pl.pallas_call(
        generator_kernel,
        out_shape=jax.ShapeDtypeStruct((b_pad, img_dim), jnp.bfloat16),
        grid=grid,
        in_specs=[
            pl.BlockSpec((tb, k_pad), lambda i: (i, 0)),        # x: tiled over batch
            pl.BlockSpec((k_pad, hidden), lambda i: (0, 0)),    # W1: VMEM-resident
            pl.BlockSpec((1, hidden), lambda i: (0, 0)),        # b1: VMEM-resident
            pl.BlockSpec((hidden, img_dim), lambda i: (0, 0)),  # W2: VMEM-resident
            pl.BlockSpec((1, img_dim), lambda i: (0, 0)),       # b2: VMEM-resident
        ],
        out_specs=pl.BlockSpec((tb, img_dim), lambda i: (i, 0)),
        compiler_params=pltpu.CompilerParams(
            dimension_semantics=("parallel",),   # megacore sharding on v7x
        ),
        cost_estimate=cost,
    )(x_p, w1_p, b1_p, w2_p, b2_p)

    # Only ragged batches need a row slice; no column slice ever.
    if b_pad != B:
        out = out[:B]
    return out


def init_generator_params(key, z_dim, img_dim, hidden=256):
    """Deterministic init mirroring nn.Linear's U(-1/sqrt(fan_in), 1/sqrt(fan_in))."""
    k1, k2, k3, k4 = jax.random.split(key, 4)
    lim1 = 1.0 / jnp.sqrt(z_dim)
    lim2 = 1.0 / jnp.sqrt(hidden)
    w1 = jax.random.uniform(k1, (z_dim, hidden), jnp.float32, -lim1, lim1)
    b1 = jax.random.uniform(k2, (hidden,), jnp.float32, -lim1, lim1)
    w2 = jax.random.uniform(k3, (hidden, img_dim), jnp.float32, -lim2, lim2)
    b2 = jax.random.uniform(k4, (img_dim,), jnp.float32, -lim2, lim2)
    return w1, b1, w2, b2


if __name__ == "__main__":
    z_dim = 64
    img_dim = 28 * 28  # MNIST flattened, as in the original GAN script
    batch = 64         # small, but enough to exercise batch tiling

    key = jax.random.PRNGKey(0)
    k_params, k_noise = jax.random.split(key)

    w1, b1, w2, b2 = init_generator_params(k_params, z_dim, img_dim)
    x = jax.random.normal(k_noise, (batch, z_dim), jnp.float32)

    # One-time weight prep (hoisted out of the per-call path).
    params = prepare_generator_params(w1, b1, w2, b2)

    # tb=32 -> grid of 2 steps: exercises the batch-tiled pipeline and matches
    # the "at least 2 parallel steps" recommendation for dual-TC v7x.
    out = generator_forward(x, params, tb=32)
    out = jax.block_until_ready(out)

    # Reference check in plain JAX (f32, no Pallas).  Tolerance accounts for
    # bf16 MXU operands and the bf16 output store.
    h_ref = x @ w1 + b1
    h_ref = jnp.where(h_ref > 0, h_ref, 0.1 * h_ref)
    ref = jnp.tanh(h_ref @ w2 + b2)
    assert out.shape == (batch, img_dim)
    assert out.dtype == jnp.bfloat16
    assert jnp.allclose(out.astype(jnp.float32), ref, atol=2e-2, rtol=2e-2)

    print("KERNEL_OK")
</pallas_src>

<mosaic_0001>
module attributes {stable_mosaic.version = 11 : i64} {
  func.func @generator_kernel(%arg0: i32, %arg1: memref<32x128xbf16, #tpu.memory_space<vmem>>, %arg2: memref<128x256xbf16, #tpu.memory_space<vmem>>, %arg3: memref<1x256xf32, #tpu.memory_space<vmem>>, %arg4: memref<256x784xbf16, #tpu.memory_space<vmem>>, %arg5: memref<1x784xf32, #tpu.memory_space<vmem>>, %arg6: memref<32x784xbf16, #tpu.memory_space<vmem>>) attributes {dimension_semantics = [#tpu.dimension_semantics<parallel>], iteration_bounds = array<i64: 2>, scalar_prefetch = 0 : i64, scratch_operands = 0 : i64, tpu.core_type = #tpu.core_type<tc>, window_params = [{transform_indices = @transform_0, window_bounds = array<i64: 32, 128>}, {pipeline_mode = #tpu.pipeline_mode<synchronous>, transform_indices = @transform_1, window_bounds = array<i64: 128, 256>}, {pipeline_mode = #tpu.pipeline_mode<synchronous>, transform_indices = @transform_2, window_bounds = array<i64: 1, 256>}, {pipeline_mode = #tpu.pipeline_mode<synchronous>, transform_indices = @transform_3, window_bounds = array<i64: 256, 784>}, {pipeline_mode = #tpu.pipeline_mode<synchronous>, transform_indices = @transform_4, window_bounds = array<i64: 1, 784>}, {transform_indices = @transform_5, window_bounds = array<i64: 32, 784>}]} {
    %c0 = arith.constant 0 : index
    %c0_0 = arith.constant 0 : index
    %0 = vector.load %arg1[%c0, %c0_0] : memref<32x128xbf16, #tpu.memory_space<vmem>>, vector<32x128xbf16>
    %c0_1 = arith.constant 0 : index
    %c0_2 = arith.constant 0 : index
    %1 = vector.load %arg2[%c0_1, %c0_2] : memref<128x256xbf16, #tpu.memory_space<vmem>>, vector<128x256xbf16>
    %cst = arith.constant dense<0.000000e+00> : vector<32x256xf32>
    %2 = tpu.matmul %0, %1, %cst {dimension_numbers = #tpu.dot_dimension_numbers<[1], [0], [0], [1], [0, 0, 1, 1], [], []>} : vector<32x128xbf16>, vector<128x256xbf16>, vector<32x256xf32> -> vector<32x256xf32>
    %c0_3 = arith.constant 0 : index
    %c0_4 = arith.constant 0 : index
    %3 = vector.load %arg3[%c0_3, %c0_4] : memref<1x256xf32, #tpu.memory_space<vmem>>, vector<1x256xf32>
    %4 = vector.broadcast %3 : vector<1x256xf32> to vector<32x256xf32>
    %5 = arith.addf %2, %4 : vector<32x256xf32>
    %cst_5 = arith.constant 0.000000e+00 : f32
    %6 = vector.broadcast %cst_5 : f32 to vector<32x256xf32>
    %7 = arith.cmpf ogt, %5, %6 : vector<32x256xf32>
    %cst_6 = arith.constant 1.000000e-01 : f32
    %8 = vector.broadcast %cst_6 : f32 to vector<32x256xf32>
    %9 = arith.mulf %8, %5 : vector<32x256xf32>
    %10 = arith.select %7, %5, %9 : vector<32x256xi1>, vector<32x256xf32>
    %11 = arith.truncf %10 : vector<32x256xf32> to vector<32x256xbf16>
    %c0_7 = arith.constant 0 : index
    %c0_8 = arith.constant 0 : index
    %12 = vector.load %arg4[%c0_7, %c0_8] : memref<256x784xbf16, #tpu.memory_space<vmem>>, vector<256x784xbf16>
    %cst_9 = arith.constant dense<0.000000e+00> : vector<32x784xf32>
    %13 = tpu.matmul %11, %12, %cst_9 {dimension_numbers = #tpu.dot_dimension_numbers<[1], [0], [0], [1], [0, 0, 1, 1], [], []>} : vector<32x256xbf16>, vector<256x784xbf16>, vector<32x784xf32> -> vector<32x784xf32>
    %c0_10 = arith.constant 0 : index
    %c0_11 = arith.constant 0 : index
    %14 = vector.load %arg5[%c0_10, %c0_11] : memref<1x784xf32, #tpu.memory_space<vmem>>, vector<1x784xf32>
    %15 = vector.broadcast %14 : vector<1x784xf32> to vector<32x784xf32>
    %16 = arith.addf %13, %15 : vector<32x784xf32>
    %17 = math.tanh %16 : vector<32x784xf32>
    %18 = arith.truncf %17 : vector<32x784xf32> to vector<32x784xbf16>
    %c0_12 = arith.constant 0 : index
    %c0_13 = arith.constant 0 : index
    %19 = vector.load %arg6[%c0_12, %c0_13] : memref<32x784xbf16, #tpu.memory_space<vmem>>, vector<32x784xbf16>
    tpu.vector_store %arg6[%c0_12, %c0_13], %18 {strides = array<i32>} : memref<32x784xbf16, #tpu.memory_space<vmem>>, vector<32x784xbf16>,
    return
  }
  func.func @transform_0(%arg0: i32) -> (i32, i32) {
    %c0_i32 = arith.constant 0 : i32
    %c0_i32_0 = arith.constant 0 : i32
    return %arg0, %c0_i32 : i32, i32
  }
  func.func @transform_1(%arg0: i32) -> (i32, i32) {
    %c0_i32 = arith.constant 0 : i32
    %c0_i32_0 = arith.constant 0 : i32
    %c0_i32_1 = arith.constant 0 : i32
    return %c0_i32, %c0_i32_0 : i32, i32
  }
  func.func @transform_2(%arg0: i32) -> (i32, i32) {
    %c0_i32 = arith.constant 0 : i32
    %c0_i32_0 = arith.constant 0 : i32
    %c0_i32_1 = arith.constant 0 : i32
    return %c0_i32, %c0_i32_0 : i32, i32
  }
  func.func @transform_3(%arg0: i32) -> (i32, i32) {
    %c0_i32 = arith.constant 0 : i32
    %c0_i32_0 = arith.constant 0 : i32
    %c0_i32_1 = arith.constant 0 : i32
    return %c0_i32, %c0_i32_0 : i32, i32
  }
  func.func @transform_4(%arg0: i32) -> (i32, i32) {
    %c0_i32 = arith.constant 0 : i32
    %c0_i32_0 = arith.constant 0 : i32
    %c0_i32_1 = arith.constant 0 : i32
    return %c0_i32, %c0_i32_0 : i32, i32
  }
  func.func @transform_5(%arg0: i32) -> (i32, i32) {
    %c0_i32 = arith.constant 0 : i32
    %c0_i32_0 = arith.constant 0 : i32
    return %arg0, %c0_i32 : i32, i32
  }
}

</mosaic_0001>

<llo_original>
// kernel: tpu_custom_call.1
$region0: #{tpu_custom_call.1}
  #allocation0 [shape = 'u32[]', space=smem, size = 0x4, offset = 0x4, fixed_abs, tag = 'smem constant byte address 0x4 - core index']
  #allocation1 [shape = 'u32[144,128]{1,0:T(1,128)}', space=vmem, size = 0x12000, scoped, tag = 'internal scratch']
  %s0 = inlined_call_operand.vmem [shape: bf16[64,128], index: 0, kind: input, shape index: {}]
  %s1 = inlined_call_operand.vmem [shape: bf16[128,256], index: 1, kind: input, shape index: {}]
  %s2 = inlined_call_operand.vmem [shape: f32[1,256], index: 2, kind: input, shape index: {}]
  %s3 = inlined_call_operand.vmem [shape: bf16[256,784], index: 3, kind: input, shape index: {}]
  %s4 = inlined_call_operand.vmem [shape: f32[1,784], index: 4, kind: input, shape index: {}]
  %s5 = inlined_call_operand.hbm [shape: bf16[64,784], index: 5, kind: output, shape index: {}]
  %s6 = sld [smem:[#allocation0]]
  $region53: #{tpu_custom_call.1} parent=0
    _
  %s8 = ssub.s32 1, %s6
  %s9 = scalar_select 0, %s8, %s6
  $region1: #{tpu_custom_call.1} parent=0
    #allocation2 [shape = 'u8[114688]{0}', space=vmem, size = 0x1c000, scoped, tag = 'output window, operand 0']
    #allocation3 [shape = 's32[2]{0}', space=sflag, size = 0x8, scoped, tag = 'scoped memory for tpu_custom_call.1']
    %10 = vsyncpa [#allocation3], 0
    %s11 = scalar_lea.sflag [#allocation3], 1
    %12 = vsyncpa %s11, 0
    loop: start=0, step=1, limit=4
    $region2: #{tpu_custom_call.1} parent=1 // loop_pre_header
      _
    $region3: #{tpu_custom_call.1} parent=1 // loop_header
      %s14 = sphi 0, %s18
      %p15 = scmp.ge.s32.totalorder %s14, 4
      %s24 = sphi 0, %s26
      %s27 = sphi 0, %s24
      %s28 = sphi 0, %s27
      %s44 = sphi 0, %s28
      %s48 = sphi 0, %s48
      %s50 = sphi 0, %s48
      %s51 = sphi 0, %s50
      %s65 = sphi 0, %s51
      %s69 = sphi 0, %s69
      %s71 = sphi 0, %s69
      %s72 = sphi 0, %s71
      %s86 = sphi 0, %s72
      %s90 = sphi 0, %s90
      %s92 = sphi 0, %s90
      %s93 = sphi 0, %s92
      %s107 = sphi 0, %s93
      %s111 = sphi 0, %s111
      %s113 = sphi 0, %s111
      %s114 = sphi 0, %s113
      %s128 = sphi 0, %s114
      %s134 = sphi 0, %s136
      %s137 = sphi 0, %s134
      %s138 = sphi 0, %s137
      %s154 = sphi 0, %s138
    $region4: #{tpu_custom_call.1} parent=1 // loop_header_branch
      %17 = sbr.rel (%p15) target = $region8
    $region5: #{tpu_custom_call.1} parent=1 // loop_body
      %s19 = ssub.s32 %s14, 1
      %s20 = ssub.s32 %s14, 2
      %s21 = sadd.s32 %s14, 1
      %s22 = ssub.s32 %s14, %s21
      %p23 = scmp.eq.s32.totalorder %s22, 0
      %s25 = sadd.s32 %s24, 1
      %s26 = scalar_select %p23, %s24, %s25
      %p29 = pneg %p23
      %p30 = scmp.eq.s32.totalorder %s14, 1
      %p31 = por %p29, %p30
      %p32 = scmp.ne.s32.totalorder %s24, %s27
      %p33 = scmp.eq.s32.totalorder %s14, 0
      %p34 = por %p32, %p33
      %p35 = scmp.ne.s32.totalorder %s24, %s27
      %p36 = scmp.eq.s32.totalorder %s19, 1
      %p37 = por %p35, %p36
      %p38 = scmp.ne.s32.totalorder %s27, %s28
      %p39 = scmp.eq.s32.totalorder %s19, 0
      %p40 = por %p38, %p39
      %p41 = scmp.ne.s32.totalorder %s27, %s28
      %p42 = scmp.eq.s32.totalorder %s20, 1
      %p43 = por %p41, %p42
      %p45 = scmp.ne.s32.totalorder %s28, %s44
      %p46 = scmp.eq.s32.totalorder %s20, 0
      %p47 = por %p45, %p46
      %s49 = sadd.s32 %s48, 1
      %p52 = scmp.eq.s32.totalorder %s14, 1
      %p53 = scmp.ne.s32.totalorder %s48, %s50
      %p54 = scmp.eq.s32.totalorder %s14, 0
      %p55 = por %p53, %p54
      %p56 = scmp.ne.s32.totalorder %s48, %s50
      %p57 = scmp.eq.s32.totalorder %s19, 1
      %p58 = por %p56, %p57
      %p59 = scmp.ne.s32.totalorder %s50, %s51
      %p60 = scmp.eq.s32.totalorder %s19, 0
      %p61 = por %p59, %p60
      %p62 = scmp.ne.s32.totalorder %s50, %s51
      %p63 = scmp.eq.s32.totalorder %s20, 1
      %p64 = por %p62, %p63
      %p66 = scmp.ne.s32.totalorder %s51, %s65
      %p67 = scmp.eq.s32.totalorder %s20, 0
      %p68 = por %p66, %p67
      %s70 = sadd.s32 %s69, 1
      %p73 = scmp.eq.s32.totalorder %s14, 1
      %p74 = scmp.ne.s32.totalorder %s69, %s71
      %p75 = scmp.eq.s32.totalorder %s14, 0
      %p76 = por %p74, %p75
      %p77 = scmp.ne.s32.totalorder %s69, %s71
      %p78 = scmp.eq.s32.totalorder %s19, 1
      %p79 = por %p77, %p78
      %p80 = scmp.ne.s32.totalorder %s71, %s72
      %p81 = scmp.eq.s32.totalorder %s19, 0
      %p82 = por %p80, %p81
      %p83 = scmp.ne.s32.totalorder %s71, %s72
      %p84 = scmp.eq.s32.totalorder %s20, 1
      %p85 = por %p83, %p84
      %p87 = scmp.ne.s32.totalorder %s72, %s86
      %p88 = scmp.eq.s32.totalorder %s20, 0
      %p89 = por %p87, %p88
      %s91 = sadd.s32 %s90, 1
      %p94 = scmp.eq.s32.totalorder %s14, 1
      %p95 = scmp.ne.s32.totalorder %s90, %s92
      %p96 = scmp.eq.s32.totalorder %s14, 0
      %p97 = por %p95, %p96
      %p98 = scmp.ne.s32.totalorder %s90, %s92
      %p99 = scmp.eq.s32.totalorder %s19, 1
      %p100 = por %p98, %p99
      %p101 = scmp.ne.s32.totalorder %s92, %s93
      %p102 = scmp.eq.s32.totalorder %s19, 0
      %p103 = por %p101, %p102
      %p104 = scmp.ne.s32.totalorder %s92, %s93
      %p105 = scmp.eq.s32.totalorder %s20, 1
      %p106 = por %p104, %p105
      %p108 = scmp.ne.s32.totalorder %s93, %s107
      %p109 = scmp.eq.s32.totalorder %s20, 0
      %p110 = por %p108, %p109
      %s112 = sadd.s32 %s111, 1
      %p115 = scmp.eq.s32.totalorder %s14, 1
      %p116 = scmp.ne.s32.totalorder %s111, %s113
      %p117 = scmp.eq.s32.totalorder %s14, 0
      %p118 = por %p116, %p117
      %p119 = scmp.ne.s32.totalorder %s111, %s113
      %p120 = scmp.eq.s32.totalorder %s19, 1
      %p121 = por %p119, %p120
      %p122 = scmp.ne.s32.totalorder %s113, %s114
      %p123 = scmp.eq.s32.totalorder %s19, 0
      %p124 = por %p122, %p123
      %p125 = scmp.ne.s32.totalorder %s113, %s114
      %p126 = scmp.eq.s32.totalorder %s20, 1
      %p127 = por %p125, %p126
      %p129 = scmp.ne.s32.totalorder %s114, %s128
      %p130 = scmp.eq.s32.totalorder %s20, 0
      %p131 = por %p129, %p130
      %s132 = ssub.s32 %s14, %s21
      %p133 = scmp.eq.s32.totalorder %s132, 0
      %s135 = sadd.s32 %s134, 1
      %s136 = scalar_select %p133, %s134, %s135
      %p139 = pneg %p133
      %p140 = scmp.eq.s32.totalorder %s14, 1
      %p141 = por %p139, %p140
      %p142 = scmp.ne.s32.totalorder %s134, %s137
      %p143 = scmp.eq.s32.totalorder %s14, 0
      %p144 = por %p142, %p143
      %p145 = scmp.ne.s32.totalorder %s134, %s137
      %p146 = scmp.eq.s32.totalorder %s19, 1
      %p147 = por %p145, %p146
      %p148 = scmp.ne.s32.totalorder %s137, %s138
      %p149 = scmp.eq.s32.totalorder %s19, 0
      %p150 = por %p148, %p149
      %p151 = scmp.ne.s32.totalorder %s137, %s138
      %p152 = scmp.eq.s32.totalorder %s20, 1
      %p153 = por %p151, %p152
      %p155 = scmp.ne.s32.totalorder %s138, %s154
      %p156 = scmp.eq.s32.totalorder %s20, 0
      %p157 = por %p155, %p156
      %p158 = scmp.le.s32.totalorder 1, %s14
      %p159 = scmp.lt.s32.totalorder %s14, 3
      %p160 = pnand %p158, %p159
      %p161 = pneg %p160
      // Predicated region
      $region9: #{tpu_custom_call.1} parent=5 // pred_check
        _
      $region10: #{tpu_custom_call.1} parent=5 // pred_check_branch
        %163 = sbr.rel (%p160) target = $region12
      $region11: #{tpu_custom_call.1} parent=5 // pred_region
        %s164 = ssub.s32 %s14, 1
        // Predicated region
        $region13: #{tpu_custom_call.1} parent=11 // pred_check
          %p165 = pneg %p61
        $region14: #{tpu_custom_call.1} parent=11 // pred_check_branch
          %167 = sbr.rel (%p165) target = $region16
        $region15: #{tpu_custom_call.1} parent=11 // pred_region
          _
        $region16: #{tpu_custom_call.1} parent=11 // pred_fallthru
          _
        // Predicated region
        $region17: #{tpu_custom_call.1} parent=11 // pred_check
          %p168 = pneg %p82
        $region18: #{tpu_custom_call.1} parent=11 // pred_check_branch
          %170 = sbr.rel (%p168) target = $region20
        $region19: #{tpu_custom_call.1} parent=11 // pred_region
          _
        $region20: #{tpu_custom_call.1} parent=11 // pred_fallthru
          _
        // Predicated region
        $region21: #{tpu_custom_call.1} parent=11 // pred_check
          %p171 = pneg %p103
        $region22: #{tpu_custom_call.1} parent=11 // pred_check_branch
          %173 = sbr.rel (%p171) target = $region24
        $region23: #{tpu_custom_call.1} parent=11 // pred_region
          _
        $region24: #{tpu_custom_call.1} parent=11 // pred_fallthru
          _
        // Predicated region
        $region25: #{tpu_custom_call.1} parent=11 // pred_check
          %p174 = pneg %p124
        $region26: #{tpu_custom_call.1} parent=11 // pred_check_branch
          %176 = sbr.rel (%p174) target = $region28
        $region27: #{tpu_custom_call.1} parent=11 // pred_region
          _
        $region28: #{tpu_custom_call.1} parent=11 // pred_fallthru
          _
      $region12: #{tpu_custom_call.1} parent=5 // pred_fallthru
        _
      %p177 = scmp.lt.s32.totalorder %s14, 2
      // Predicated region
      $region29: #{tpu_custom_call.1} parent=5 // pred_check
        %p178 = pneg %p177
      $region30: #{tpu_custom_call.1} parent=5 // pred_check_branch
        %180 = sbr.rel (%p178) target = $region32
      $region31: #{tpu_custom_call.1} parent=5 // pred_region
        // Predicated region
        $region33: #{tpu_custom_call.1} parent=31 // pred_check
          %p181 = pneg %p34
        $region34: #{tpu_custom_call.1} parent=31 // pred_check_branch
          %183 = sbr.rel (%p181) target = $region36
        $region35: #{tpu_custom_call.1} parent=31 // pred_region
          %s184 = smul.u32 4, %s14
          %p185 = scmp.lt.s32.totalorder %s184, 7
          %s186 = scalar_select %p185, %s184, 7
          %s187 = smul.addr %s186, 4
          %s188 = scalar_lea.vmem %s0, %s187
          %s189 = smul.u32 4, %s14
        $region36: #{tpu_custom_call.1} parent=31 // pred_fallthru
          _
      $region32: #{tpu_custom_call.1} parent=5 // pred_fallthru
        _
      %p190 = scmp.le.s32.totalorder 1, %s14
      %p191 = scmp.lt.s32.totalorder %s14, 3
      %p192 = pnand %p190, %p191
      %p193 = pneg %p192
      // Predicated region
      $region37: #{tpu_custom_call.1} parent=5 // pred_check
        _
      $region38: #{tpu_custom_call.1} parent=5 // pred_check_branch
        %195 = sbr.rel (%p192) target = $region40
      $region39: #{tpu_custom_call.1} parent=5 // pred_region
        %s196 = ssub.s32 %s14, 1
        %s197 = smul.u32 4, %s19
        %p198 = scmp.lt.s32.totalorder %s197, 7
        %s199 = scalar_select %p198, %s197, 7
        %s200 = smul.addr %s199, 4
        %s201 = scalar_lea.vmem %s0, %s200
        %p202 = pneg %p40
        %p203 = pneg %p37
        %p204 = pneg %p61
        %p205 = pneg %p58
        %p206 = pneg %p82
        %p207 = pneg %p79
        %p208 = pneg %p103
        %p209 = pneg %p100
        %p210 = pneg %p124
        %p211 = pneg %p121
        %p212 = pneg %p150
        %p213 = pneg %p147
        %s214 = sand.u32 %s137, 1
        %s215 = scalar_lea.sflag [#allocation3], %s214
        %s216 = sand.u32 %s137, 1
        %s217 = smul.addr %s216, 112
        %s218 = scalar_lea.vmem [#allocation2], %s217
        %s219 = smul.u32 4, %s19
        %p220 = scmp.lt.s32.totalorder %s219, 7
        %s221 = scalar_select %p220, %s219, 7
        %s222 = smul.addr %s221, 4
        %s223 = scalar_lea.vmem %s0, %s222
        %s224 = smul.u32 4, %s19
        %s225 = smul.u32 4, %s19
        %v227 = vld [vmem:[%s223] sm:$0xf]
        %v228 = vld [vmem:[%s223 + $0x4] sm:$0xf]
        %v229 = vld [vmem:[%s223 + $0x8] sm:$0xf]
        %v230 = vld [vmem:[%s223 + $0xc] sm:$0xf]
        %v231 = vld [vmem:[%s1] sm:$0xff]
        %v232 = vld [vmem:[%s1 + $0x8] sm:$0xff]
        %v233 = vld [vmem:[%s1 + $0x10] sm:$0xff]
        %v234 = vld [vmem:[%s1 + $0x18] sm:$0xff]
        %v235 = vld [vmem:[%s1 + $0x20] sm:$0xff]
        %v236 = vld [vmem:[%s1 + $0x28] sm:$0xff]
        %v237 = vld [vmem:[%s1 + $0x30] sm:$0xff]
        %v238 = vld [vmem:[%s1 + $0x38] sm:$0xff]
        %v239 = vld [vmem:[%s1 + $0x40] sm:$0xff]
        %v240 = vld [vmem:[%s1 + $0x48] sm:$0xff]
        %v241 = vld [vmem:[%s1 + $0x50] sm:$0xff]
        %v242 = vld [vmem:[%s1 + $0x58] sm:$0xff]
        %v243 = vld [vmem:[%s1 + $0x60] sm:$0xff]
        %v244 = vld [vmem:[%s1 + $0x68] sm:$0xff]
        %v245 = vld [vmem:[%s1 + $0x70] sm:$0xff]
        %v246 = vld [vmem:[%s1 + $0x78] sm:$0xff]
        %v247 = vld [vmem:[%s2] sm:$0x3]
        %v249 = vlaneseq
        %v250 = vshrl.u32 %v249, 7
        %v251 = vsub.s32 0, %v250
        %v252 = vrot.slane %v247, %v251
        %v253 = vlaneseq
        %v254 = vshrl.u32 %v253, 7
        %v255 = vsub.s32 1, %v254
        %v256 = vrot.slane %v247, %v255
        %v263 = vunpack.c.l.b16 %v227
        %v264 = vunpack.c.l.b16 %v228
        %v265 = vunpack.c.l.b16 %v229
        %v266 = vunpack.c.l.b16 %v230
        %v267 = vpack.c.b16 %v264, %v263
        %v268 = vpack.c.b16 %v266, %v265
        %v287 = vunpack.c.l.b16 %v231
        %v288 = vunpack.c.h.b16 %v231
        %v289 = vunpack.c.l.b16 %v232
        %v290 = vunpack.c.h.b16 %v232
        %v291 = vunpack.c.l.b16 %v233
        %v292 = vunpack.c.h.b16 %v233
        %v293 = vunpack.c.l.b16 %v234
        %v294 = vunpack.c.h.b16 %v234
        %v295 = vunpack.c.l.b16 %v235
        %v296 = vunpack.c.h.b16 %v235
        %v297 = vunpack.c.l.b16 %v236
        %v298 = vunpack.c.h.b16 %v236
        %v299 = vunpack.c.l.b16 %v237
        %v300 = vunpack.c.h.b16 %v237
        %v301 = vunpack.c.l.b16 %v238
        %v302 = vunpack.c.h.b16 %v238
        %v303 = vunpack.c.l.b16 %v239
        %v304 = vunpack.c.h.b16 %v239
        %v305 = vunpack.c.l.b16 %v240
        %v306 = vunpack.c.h.b16 %v240
        %v307 = vunpack.c.l.b16 %v241
        %v308 = vunpack.c.h.b16 %v241
        %v309 = vunpack.c.l.b16 %v242
        %v310 = vunpack.c.h.b16 %v242
        %v311 = vunpack.c.l.b16 %v243
        %v312 = vunpack.c.h.b16 %v243
        %v313 = vunpack.c.l.b16 %v244
        %v314 = vunpack.c.h.b16 %v244
        %v315 = vunpack.c.l.b16 %v245
        %v316 = vunpack.c.h.b16 %v245
        %v317 = vunpack.c.l.b16 %v246
        %v318 = vunpack.c.h.b16 %v246
        %v319 = vpack.c.b16 %v289, %v287
        %v320 = vpack.c.b16 %v290, %v288
        %v321 = vpack.c.b16 %v293, %v291
        %v322 = vpack.c.b16 %v294, %v292
        %v323 = vpack.c.b16 %v297, %v295
        %v324 = vpack.c.b16 %v298, %v296
        %v325 = vpack.c.b16 %v301, %v299
        %v326 = vpack.c.b16 %v302, %v300
        %v327 = vpack.c.b16 %v305, %v303
        %v328 = vpack.c.b16 %v306, %v304
        %v329 = vpack.c.b16 %v309, %v307
        %v330 = vpack.c.b16 %v310, %v308
        %v331 = vpack.c.b16 %v313, %v311
        %v332 = vpack.c.b16 %v314, %v312
        %v333 = vpack.c.b16 %v317, %v315
        %v334 = vpack.c.b16 %v318, %v316
        %351 = vmatprep.subr.bf16.mxu0 %v320
        %352 = vmatpush1.bf16.msra.mxu0 %v319
        %353 = vmatprep.subr.bf16.mxu0 %v322
        %354 = vmatpush1.bf16.msra.mxu0 %v321
        %355 = vmatprep.subr.bf16.mxu0 %v324
        %356 = vmatpush1.bf16.msra.mxu0 %v323
        %357 = vmatprep.subr.bf16.mxu0 %v326
        %358 = vmatpush1.bf16.msra.mxu0 %v325
        %359 = vmatprep.subr.bf16.mxu0 %v328
        %360 = vmatpush1.bf16.msra.mxu0 %v327
        %361 = vmatprep.subr.bf16.mxu0 %v330
        %362 = vmatpush1.bf16.msra.mxu0 %v329
        %363 = vmatprep.subr.bf16.mxu0 %v332
        %364 = vmatpush1.bf16.msra.mxu0 %v331
        %365 = vmatprep.subr.bf16.mxu0 %v334
        %366 = vmatpush1.bf16.msra.mxu0 %v333
        %367 = vmatprep.subr.bf16.mxu0 0
        %368 = vmatpush1.bf16.msra.mxu0 0
        %369 = vmatprep.subr.bf16.mxu0 0
        %370 = vmatpush1.bf16.msra.mxu0 0
        %371 = vmatprep.subr.bf16.mxu0 0
        %372 = vmatpush1.bf16.msra.mxu0 0
        %373 = vmatprep.subr.bf16.mxu0 0
        %374 = vmatpush1.bf16.msra.mxu0 0
        %375 = vmatprep.subr.bf16.mxu0 0
        %376 = vmatpush1.bf16.msra.mxu0 0
        %377 = vmatprep.subr.bf16.mxu0 0
        %378 = vmatpush1.bf16.msra.mxu0 0
        %379 = vmatprep.subr.bf16.mxu0 0
        %380 = vmatpush1.bf16.msra.mxu0 0
        %381 = vmatprep.subr.bf16.mxu0 0
        %382 = vmatpush1.bf16.msra.mxu0 0
        %383 = vmatprep.mubr.bf16.mxu0 0
        %384 = vmatmul.mubr.bf16.gmra.mrb[0].mxu0 %v267
        %v385 = vpop.f32.mrb[0].mxu0
        %v386 = vadd.f32 %v252, %v385
        %v387 = vpop.f32.mrb[0].mxu0
        %v388 = vadd.f32 %v256, %v387
        %v389 = vpop.f32.mrb[0].mxu0
        %v390 = vadd.f32 %v252, %v389
        %v391 = vpop.f32.mrb[0].mxu0
        %v392 = vadd.f32 %v256, %v391
        %393 = vmatprep.mubr.bf16.mxu0 0
        %394 = vmatmul.mubr.bf16.gmra.mrb[0].mxu0 %v268
        %v395 = vpop.f32.mrb[0].mxu0
        %v396 = vadd.f32 %v252, %v395
        %v397 = vpop.f32.mrb[0].mxu0
        %v398 = vadd.f32 %v256, %v397
        %v399 = vpop.f32.mrb[0].mxu0
        %v400 = vadd.f32 %v252, %v399
        %v401 = vpop.f32.mrb[0].mxu0
        %v402 = vadd.f32 %v256, %v401
        %403 = vdwg.mxu0
        %vm404 = vcmp.gt.f32.partialorder %v386, 0.0
        %vm405 = vcmp.gt.f32.partialorder %v388, 0.0
        %vm406 = vcmp.gt.f32.partialorder %v390, 0.0
        %vm407 = vcmp.gt.f32.partialorder %v392, 0.0
        %vm408 = vcmp.gt.f32.partialorder %v396, 0.0
        %vm409 = vcmp.gt.f32.partialorder %v398, 0.0
        %vm410 = vcmp.gt.f32.partialorder %v400, 0.0
        %vm411 = vcmp.gt.f32.partialorder %v402, 0.0
        %v412 = vmul.f32 %v386, 0.1
        %v413 = vmul.f32 %v388, 0.1
        %v414 = vmul.f32 %v390, 0.1
        %v415 = vmul.f32 %v392, 0.1
        %v416 = vmul.f32 %v396, 0.1
        %v417 = vmul.f32 %v398, 0.1
        %v418 = vmul.f32 %v400, 0.1
        %v419 = vmul.f32 %v402, 0.1
        %v420 = vsel %vm404, %v386, %v412
        %v421 = vsel %vm405, %v388, %v413
        %v422 = vsel %vm406, %v390, %v414
        %v423 = vsel %vm407, %v392, %v415
        %v424 = vsel %vm408, %v396, %v416
        %v425 = vsel %vm409, %v398, %v417
        %v426 = vsel %vm410, %v400, %v418
        %v427 = vsel %vm411, %v402, %v419
        %v428 = vpack.c.bf16 %v422, %v420
        %v429 = vpack.c.bf16 %v423, %v421
        %v430 = vpack.c.bf16 %v426, %v424
        %v431 = vpack.c.bf16 %v427, %v425
        %v432 = vld [vmem:[%s3] sm:$0xff]
        %v433 = vld [vmem:[%s3 + $0x8] sm:$0xff]
        %v434 = vld [vmem:[%s3 + $0x10] sm:$0xff]
        %v435 = vld [vmem:[%s3 + $0x18] sm:$0xf]
        %v436 = vld [vmem:[%s3 + $0x1c] sm:$0xff]
        %v437 = vld [vmem:[%s3 + $0x24] sm:$0xff]
        %v438 = vld [vmem:[%s3 + $0x2c] sm:$0xff]
        %v439 = vld [vmem:[%s3 + $0x34] sm:$0xf]
        %v440 = vld [vmem:[%s3 + $0x38] sm:$0xff]
        %v441 = vld [vmem:[%s3 + $0x40] sm:$0xff]
        %v442 = vld [vmem:[%s3 + $0x48] sm:$0xff]
        %v443 = vld [vmem:[%s3 + $0x50] sm:$0xf]
        %v444 = vld [vmem:[%s3 + $0x54] sm:$0xff]
        %v445 = vld [vmem:[%s3 + $0x5c] sm:$0xff]
        %v446 = vld [vmem:[%s3 + $0x64] sm:$0xff]
        %v447 = vld [vmem:[%s3 + $0x6c] sm:$0xf]
        %v448 = vld [vmem:[%s3 + $0x70] sm:$0xff]
        %v449 = vld [vmem:[%s3 + $0x78] sm:$0xff]
        %v450 = vld [vmem:[%s3 + $0x80] sm:$0xff]
        %v451 = vld [vmem:[%s3 + $0x88] sm:$0xf]
        %v452 = vld [vmem:[%s3 + $0x8c] sm:$0xff]
        %v453 = vld [vmem:[%s3 + $0x94] sm:$0xff]
        %v454 = vld [vmem:[%s3 + $0x9c] sm:$0xff]
        %v455 = vld [vmem:[%s3 + $0xa4] sm:$0xf]
        %v456 = vld [vmem:[%s3 + $0xa8] sm:$0xff]
        %v457 = vld [vmem:[%s3 + $0xb0] sm:$0xff]
        %v458 = vld [vmem:[%s3 + $0xb8] sm:$0xff]
        %v459 = vld [vmem:[%s3 + $0xc0] sm:$0xf]
        %v460 = vld [vmem:[%s3 + $0xc4] sm:$0xff]
        %v461 = vld [vmem:[%s3 + $0xcc] sm:$0xff]
        %v462 = vld [vmem:[%s3 + $0xd4] sm:$0xff]
        %v463 = vld [vmem:[%s3 + $0xdc] sm:$0xf]
        %v464 = vld [vmem:[%s3 + $0xe0] sm:$0xff]
        %v465 = vld [vmem:[%s3 + $0xe8] sm:$0xff]
        %v466 = vld [vmem:[%s3 + $0xf0] sm:$0xff]
        %v467 = vld [vmem:[%s3 + $0xf8] sm:$0xf]
        %v468 = vld [vmem:[%s3 + $0xfc] sm:$0xff]
        %v469 = vld [vmem:[%s3 + $0x104] sm:$0xff]
        %v470 = vld [vmem:[%s3 + $0x10c] sm:$0xff]
        %v471 = vld [vmem:[%s3 + $0x114] sm:$0xf]
        %v472 = vld [vmem:[%s3 + $0x118] sm:$0xff]
        %v473 = vld [vmem:[%s3 + $0x120] sm:$0xff]
        %v474 = vld [vmem:[%s3 + $0x128] sm:$0xff]
        %v475 = vld [vmem:[%s3 + $0x130] sm:$0xf]
        %v476 = vld [vmem:[%s3 + $0x134] sm:$0xff]
        %v477 = vld [vmem:[%s3 + $0x13c] sm:$0xff]
        %v478 = vld [vmem:[%s3 + $0x144] sm:$0xff]
        %v479 = vld [vmem:[%s3 + $0x14c] sm:$0xf]
        %v480 = vld [vmem:[%s3 + $0x150] sm:$0xff]
        %v481 = vld [vmem:[%s3 + $0x158] sm:$0xff]
        %v482 = vld [vmem:[%s3 + $0x160] sm:$0xff]
        %v483 = vld [vmem:[%s3 + $0x168] sm:$0xf]
        %v484 = vld [vmem:[%s3 + $0x16c] sm:$0xff]
        %v485 = vld [vmem:[%s3 + $0x174] sm:$0xff]
        %v486 = vld [vmem:[%s3 + $0x17c] sm:$0xff]
        %v487 = vld [vmem:[%s3 + $0x184] sm:$0xf]
        %v488 = vld [vmem:[%s3 + $0x188] sm:$0xff]
        %v489 = vld [vmem:[%s3 + $0x190] sm:$0xff]
        %v490 = vld [vmem:[%s3 + $0x198] sm:$0xff]
        %v491 = vld [vmem:[%s3 + $0x1a0] sm:$0xf]
        %v492 = vld [vmem:[%s3 + $0x1a4] sm:$0xff]
        %v493 = vld [vmem:[%s3 + $0x1ac] sm:$0xff]
        %v494 = vld [vmem:[%s3 + $0x1b4] sm:$0xff]
        %v495 = vld [vmem:[%s3 + $0x1bc] sm:$0xf]
        %v496 = vld [vmem:[%s3 + $0x1c0] sm:$0xff]
        %v497 = vld [vmem:[%s3 + $0x1c8] sm:$0xff]
        %v498 = vld [vmem:[%s3 + $0x1d0] sm:$0xff]
        %v499 = vld [vmem:[%s3 + $0x1d8] sm:$0xf]
        %v500 = vld [vmem:[%s3 + $0x1dc] sm:$0xff]
        %v501 = vld [vmem:[%s3 + $0x1e4] sm:$0xff]
        %v502 = vld [vmem:[%s3 + $0x1ec] sm:$0xff]
        %v503 = vld [vmem:[%s3 + $0x1f4] sm:$0xf]
        %v504 = vld [vmem:[%s3 + $0x1f8] sm:$0xff]
        %v505 = vld [vmem:[%s3 + $0x200] sm:$0xff]
        %v506 = vld [vmem:[%s3 + $0x208] sm:$0xff]
        %v507 = vld [vmem:[%s3 + $0x210] sm:$0xf]
        %v508 = vld [vmem:[%s3 + $0x214] sm:$0xff]
        %v509 = vld [vmem:[%s3 + $0x21c] sm:$0xff]
        %v510 = vld [vmem:[%s3 + $0x224] sm:$0xff]
        %v511 = vld [vmem:[%s3 + $0x22c] sm:$0xf]
        %v512 = vld [vmem:[%s3 + $0x230] sm:$0xff]
        %v513 = vld [vmem:[%s3 + $0x238] sm:$0xff]
        %v514 = vld [vmem:[%s3 + $0x240] sm:$0xff]
        %v515 = vld [vmem:[%s3 + $0x248] sm:$0xf]
        %v516 = vld [vmem:[%s3 + $0x24c] sm:$0xff]
        %v517 = vld [vmem:[%s3 + $0x254] sm:$0xff]
        %v518 = vld [vmem:[%s3 + $0x25c] sm:$0xff]
        %v519 = vld [vmem:[%s3 + $0x264] sm:$0xf]
        %v520 = vld [vmem:[%s3 + $0x268] sm:$0xff]
        %v521 = vld [vmem:[%s3 + $0x270] sm:$0xff]
        %v522 = vld [vmem:[%s3 + $0x278] sm:$0xff]
        %v523 = vld [vmem:[%s3 + $0x280] sm:$0xf]
        %v524 = vld [vmem:[%s3 + $0x284] sm:$0xff]
        %v525 = vld [vmem:[%s3 + $0x28c] sm:$0xff]
        %v526 = vld [vmem:[%s3 + $0x294] sm:$0xff]
        %v527 = vld [vmem:[%s3 + $0x29c] sm:$0xf]
        %v528 = vld [vmem:[%s3 + $0x2a0] sm:$0xff]
        %v529 = vld [vmem:[%s3 + $0x2a8] sm:$0xff]
        %v530 = vld [vmem:[%s3 + $0x2b0] sm:$0xff]
        %v531 = vld [vmem:[%s3 + $0x2b8] sm:$0xf]
        %v532 = vld [vmem:[%s3 + $0x2bc] sm:$0xff]
        %v533 = vld [vmem:[%s3 + $0x2c4] sm:$0xff]
        %v534 = vld [vmem:[%s3 + $0x2cc] sm:$0xff]
        %v535 = vld [vmem:[%s3 + $0x2d4] sm:$0xf]
        %v536 = vld [vmem:[%s3 + $0x2d8] sm:$0xff]
        %v537 = vld [vmem:[%s3 + $0x2e0] sm:$0xff]
        %v538 = vld [vmem:[%s3 + $0x2e8] sm:$0xff]
        %v539 = vld [vmem:[%s3 + $0x2f0] sm:$0xf]
        %v540 = vld [vmem:[%s3 + $0x2f4] sm:$0xff]
        %v541 = vld [vmem:[%s3 + $0x2fc] sm:$0xff]
        %v542 = vld [vmem:[%s3 + $0x304] sm:$0xff]
        %v543 = vld [vmem:[%s3 + $0x30c] sm:$0xf]
        %v544 = vld [vmem:[%s3 + $0x310] sm:$0xff]
        %v545 = vld [vmem:[%s3 + $0x318] sm:$0xff]
        %v546 = vld [vmem:[%s3 + $0x320] sm:$0xff]
        %v547 = vld [vmem:[%s3 + $0x328] sm:$0xf]
        %v548 = vld [vmem:[%s3 + $0x32c] sm:$0xff]
        %v549 = vld [vmem:[%s3 + $0x334] sm:$0xff]
        %v550 = vld [vmem:[%s3 + $0x33c] sm:$0xff]
        %v551 = vld [vmem:[%s3 + $0x344] sm:$0xf]
        %v552 = vld [vmem:[%s3 + $0x348] sm:$0xff]
        %v553 = vld [vmem:[%s3 + $0x350] sm:$0xff]
        %v554 = vld [vmem:[%s3 + $0x358] sm:$0xff]
        %v555 = vld [vmem:[%s3 + $0x360] sm:$0xf]
        %v556 = vld [vmem:[%s3 + $0x364] sm:$0xff]
        %v557 = vld [vmem:[%s3 + $0x36c] sm:$0xff]
        %v558 = vld [vmem:[%s3 + $0x374] sm:$0xff]
        %v559 = vld [vmem:[%s3 + $0x37c] sm:$0xf]
        %v560 = vld [vmem:[%s4] sm:$0x7f]
        %v562 = vlaneseq
        %v563 = vshrl.u32 %v562, 7
        %v564 = vsub.s32 0, %v563
        %v565 = vrot.slane %v560, %v564
        %v566 = vlaneseq
        %v567 = vshrl.u32 %v566, 7
        %v568 = vsub.s32 1, %v567
        %v569 = vrot.slane %v560, %v568
        %v570 = vlaneseq
        %v571 = vshrl.u32 %v570, 7
        %v572 = vsub.s32 2, %v571
        %v573 = vrot.slane %v560, %v572
        %v574 = vlaneseq
        %v575 = vshrl.u32 %v574, 7
        %v576 = vsub.s32 3, %v575
        %v577 = vrot.slane %v560, %v576
        %v578 = vlaneseq
        %v579 = vshrl.u32 %v578, 7
        %v580 = vsub.s32 4, %v579
        %v581 = vrot.slane %v560, %v580
        %v582 = vlaneseq
        %v583 = vshrl.u32 %v582, 7
        %v584 = vsub.s32 5, %v583
        %v585 = vrot.slane %v560, %v584
        %v586 = vlaneseq
        %v587 = vshrl.u32 %v586, 7
        %v588 = vsub.s32 6, %v587
        %v589 = vrot.slane %v560, %v588
        %v725 = vunpack.c.l.b16 %v432
        %v726 = vunpack.c.h.b16 %v432
        %v727 = vunpack.c.l.b16 %v433
        %v728 = vunpack.c.h.b16 %v433
        %v729 = vunpack.c.l.b16 %v434
        %v730 = vunpack.c.h.b16 %v434
        %v731 = vunpack.c.l.b16 %v435
        %v732 = vunpack.c.l.b16 %v436
        %v733 = vunpack.c.h.b16 %v436
        %v734 = vunpack.c.l.b16 %v437
        %v735 = vunpack.c.h.b16 %v437
        %v736 = vunpack.c.l.b16 %v438
        %v737 = vunpack.c.h.b16 %v438
        %v738 = vunpack.c.l.b16 %v439
        %v739 = vunpack.c.l.b16 %v440
        %v740 = vunpack.c.h.b16 %v440
        %v741 = vunpack.c.l.b16 %v441
        %v742 = vunpack.c.h.b16 %v441
        %v743 = vunpack.c.l.b16 %v442
        %v744 = vunpack.c.h.b16 %v442
        %v745 = vunpack.c.l.b16 %v443
        %v746 = vunpack.c.l.b16 %v444
        %v747 = vunpack.c.h.b16 %v444
        %v748 = vunpack.c.l.b16 %v445
        %v749 = vunpack.c.h.b16 %v445
        %v750 = vunpack.c.l.b16 %v446
        %v751 = vunpack.c.h.b16 %v446
        %v752 = vunpack.c.l.b16 %v447
        %v753 = vunpack.c.l.b16 %v448
        %v754 = vunpack.c.h.b16 %v448
        %v755 = vunpack.c.l.b16 %v449
        %v756 = vunpack.c.h.b16 %v449
        %v757 = vunpack.c.l.b16 %v450
        %v758 = vunpack.c.h.b16 %v450
        %v759 = vunpack.c.l.b16 %v451
        %v760 = vunpack.c.l.b16 %v452
        %v761 = vunpack.c.h.b16 %v452
        %v762 = vunpack.c.l.b16 %v453
        %v763 = vunpack.c.h.b16 %v453
        %v764 = vunpack.c.l.b16 %v454
        %v765 = vunpack.c.h.b16 %v454
        %v766 = vunpack.c.l.b16 %v455
        %v767 = vunpack.c.l.b16 %v456
        %v768 = vunpack.c.h.b16 %v456
        %v769 = vunpack.c.l.b16 %v457
        %v770 = vunpack.c.h.b16 %v457
        %v771 = vunpack.c.l.b16 %v458
        %v772 = vunpack.c.h.b16 %v458
        %v773 = vunpack.c.l.b16 %v459
        %v774 = vunpack.c.l.b16 %v460
        %v775 = vunpack.c.h.b16 %v460
        %v776 = vunpack.c.l.b16 %v461
        %v777 = vunpack.c.h.b16 %v461
        %v778 = vunpack.c.l.b16 %v462
        %v779 = vunpack.c.h.b16 %v462
        %v780 = vunpack.c.l.b16 %v463
        %v781 = vunpack.c.l.b16 %v464
        %v782 = vunpack.c.h.b16 %v464
        %v783 = vunpack.c.l.b16 %v465
        %v784 = vunpack.c.h.b16 %v465
        %v785 = vunpack.c.l.b16 %v466
        %v786 = vunpack.c.h.b16 %v466
        %v787 = vunpack.c.l.b16 %v467
        %v788 = vunpack.c.l.b16 %v468
        %v789 = vunpack.c.h.b16 %v468
        %v790 = vunpack.c.l.b16 %v469
        %v791 = vunpack.c.h.b16 %v469
        %v792 = vunpack.c.l.b16 %v470
        %v793 = vunpack.c.h.b16 %v470
        %v794 = vunpack.c.l.b16 %v471
        %v795 = vunpack.c.l.b16 %v472
        %v796 = vunpack.c.h.b16 %v472
        %v797 = vunpack.c.l.b16 %v473
        %v798 = vunpack.c.h.b16 %v473
        %v799 = vunpack.c.l.b16 %v474
        %v800 = vunpack.c.h.b16 %v474
        %v801 = vunpack.c.l.b16 %v475
        %v802 = vunpack.c.l.b16 %v476
        %v803 = vunpack.c.h.b16 %v476
        %v804 = vunpack.c.l.b16 %v477
        %v805 = vunpack.c.h.b16 %v477
        %v806 = vunpack.c.l.b16 %v478
        %v807 = vunpack.c.h.b16 %v478
        %v808 = vunpack.c.l.b16 %v479
        %v809 = vunpack.c.l.b16 %v480
        %v810 = vunpack.c.h.b16 %v480
        %v811 = vunpack.c.l.b16 %v481
        %v812 = vunpack.c.h.b16 %v481
        %v813 = vunpack.c.l.b16 %v482
        %v814 = vunpack.c.h.b16 %v482
        %v815 = vunpack.c.l.b16 %v483
        %v816 = vunpack.c.l.b16 %v484
        %v817 = vunpack.c.h.b16 %v484
        %v818 = vunpack.c.l.b16 %v485
        %v819 = vunpack.c.h.b16 %v485
        %v820 = vunpack.c.l.b16 %v486
        %v821 = vunpack.c.h.b16 %v486
        %v822 = vunpack.c.l.b16 %v487
        %v823 = vunpack.c.l.b16 %v488
        %v824 = vunpack.c.h.b16 %v488
        %v825 = vunpack.c.l.b16 %v489
        %v826 = vunpack.c.h.b16 %v489
        %v827 = vunpack.c.l.b16 %v490
        %v828 = vunpack.c.h.b16 %v490
        %v829 = vunpack.c.l.b16 %v491
        %v830 = vunpack.c.l.b16 %v492
        %v831 = vunpack.c.h.b16 %v492
        %v832 = vunpack.c.l.b16 %v493
        %v833 = vunpack.c.h.b16 %v493
        %v834 = vunpack.c.l.b16 %v494
        %v835 = vunpack.c.h.b16 %v494
        %v836 = vunpack.c.l.b16 %v495
        %v837 = vunpack.c.l.b16 %v496
        %v838 = vunpack.c.h.b16 %v496
        %v839 = vunpack.c.l.b16 %v497
        %v840 = vunpack.c.h.b16 %v497
        %v841 = vunpack.c.l.b16 %v498
        %v842 = vunpack.c.h.b16 %v498
        %v843 = vunpack.c.l.b16 %v499
        %v844 = vunpack.c.l.b16 %v500
        %v845 = vunpack.c.h.b16 %v500
        %v846 = vunpack.c.l.b16 %v501
        %v847 = vunpack.c.h.b16 %v501
        %v848 = vunpack.c.l.b16 %v502
        %v849 = vunpack.c.h.b16 %v502
        %v850 = vunpack.c.l.b16 %v503
        %v851 = vunpack.c.l.b16 %v504
        %v852 = vunpack.c.h.b16 %v504
        %v853 = vunpack.c.l.b16 %v505
        %v854 = vunpack.c.h.b16 %v505
        %v855 = vunpack.c.l.b16 %v506
        %v856 = vunpack.c.h.b16 %v506
        %v857 = vunpack.c.l.b16 %v507
        %v858 = vunpack.c.l.b16 %v508
        %v859 = vunpack.c.h.b16 %v508
        %v860 = vunpack.c.l.b16 %v509
        %v861 = vunpack.c.h.b16 %v509
        %v862 = vunpack.c.l.b16 %v510
        %v863 = vunpack.c.h.b16 %v510
        %v864 = vunpack.c.l.b16 %v511
        %v865 = vunpack.c.l.b16 %v512
        %v866 = vunpack.c.h.b16 %v512
        %v867 = vunpack.c.l.b16 %v513
        %v868 = vunpack.c.h.b16 %v513
        %v869 = vunpack.c.l.b16 %v514
        %v870 = vunpack.c.h.b16 %v514
        %v871 = vunpack.c.l.b16 %v515
        %v872 = vunpack.c.l.b16 %v516
        %v873 = vunpack.c.h.b16 %v516
        %v874 = vunpack.c.l.b16 %v517
        %v875 = vunpack.c.h.b16 %v517
        %v876 = vunpack.c.l.b16 %v518
        %v877 = vunpack.c.h.b16 %v518
        %v878 = vunpack.c.l.b16 %v519
        %v879 = vunpack.c.l.b16 %v520
        %v880 = vunpack.c.h.b16 %v520
        %v881 = vunpack.c.l.b16 %v521
        %v882 = vunpack.c.h.b16 %v521
        %v883 = vunpack.c.l.b16 %v522
        %v884 = vunpack.c.h.b16 %v522
        %v885 = vunpack.c.l.b16 %v523
        %v886 = vunpack.c.l.b16 %v524
        %v887 = vunpack.c.h.b16 %v524
        %v888 = vunpack.c.l.b16 %v525
        %v889 = vunpack.c.h.b16 %v525
        %v890 = vunpack.c.l.b16 %v526
        %v891 = vunpack.c.h.b16 %v526
        %v892 = vunpack.c.l.b16 %v527
        %v893 = vunpack.c.l.b16 %v528
        %v894 = vunpack.c.h.b16 %v528
        %v895 = vunpack.c.l.b16 %v529
        %v896 = vunpack.c.h.b16 %v529
        %v897 = vunpack.c.l.b16 %v530
        %v898 = vunpack.c.h.b16 %v530
        %v899 = vunpack.c.l.b16 %v531
        %v900 = vunpack.c.l.b16 %v532
        %v901 = vunpack.c.h.b16 %v532
        %v902 = vunpack.c.l.b16 %v533
        %v903 = vunpack.c.h.b16 %v533
        %v904 = vunpack.c.l.b16 %v534
        %v905 = vunpack.c.h.b16 %v534
        %v906 = vunpack.c.l.b16 %v535
        %v907 = vunpack.c.l.b16 %v536
        %v908 = vunpack.c.h.b16 %v536
        %v909 = vunpack.c.l.b16 %v537
        %v910 = vunpack.c.h.b16 %v537
        %v911 = vunpack.c.l.b16 %v538
        %v912 = vunpack.c.h.b16 %v538
        %v913 = vunpack.c.l.b16 %v539
        %v914 = vunpack.c.l.b16 %v540
        %v915 = vunpack.c.h.b16 %v540
        %v916 = vunpack.c.l.b16 %v541
        %v917 = vunpack.c.h.b16 %v541
        %v918 = vunpack.c.l.b16 %v542
        %v919 = vunpack.c.h.b16 %v542
        %v920 = vunpack.c.l.b16 %v543
        %v921 = vunpack.c.l.b16 %v544
        %v922 = vunpack.c.h.b16 %v544
        %v923 = vunpack.c.l.b16 %v545
        %v924 = vunpack.c.h.b16 %v545
        %v925 = vunpack.c.l.b16 %v546
        %v926 = vunpack.c.h.b16 %v546
        %v927 = vunpack.c.l.b16 %v547
        %v928 = vunpack.c.l.b16 %v548
        %v929 = vunpack.c.h.b16 %v548
        %v930 = vunpack.c.l.b16 %v549
        %v931 = vunpack.c.h.b16 %v549
        %v932 = vunpack.c.l.b16 %v550
        %v933 = vunpack.c.h.b16 %v550
        %v934 = vunpack.c.l.b16 %v551
        %v935 = vunpack.c.l.b16 %v552
        %v936 = vunpack.c.h.b16 %v552
        %v937 = vunpack.c.l.b16 %v553
        %v938 = vunpack.c.h.b16 %v553
        %v939 = vunpack.c.l.b16 %v554
        %v940 = vunpack.c.h.b16 %v554
        %v941 = vunpack.c.l.b16 %v555
        %v942 = vunpack.c.l.b16 %v556
        %v943 = vunpack.c.h.b16 %v556
        %v944 = vunpack.c.l.b16 %v557
        %v945 = vunpack.c.h.b16 %v557
        %v946 = vunpack.c.l.b16 %v558
        %v947 = vunpack.c.h.b16 %v558
        %v948 = vunpack.c.l.b16 %v559
        %v949 = vpack.c.b16 %v732, %v725
        %v950 = vpack.c.b16 %v733, %v726
        %v951 = vpack.c.b16 %v734, %v727
        %v952 = vpack.c.b16 %v735, %v728
        %v953 = vpack.c.b16 %v736, %v729
        %v954 = vpack.c.b16 %v737, %v730
        %v955 = vpack.c.b16 %v738, %v731
        %v956 = vpack.c.b16 %v746, %v739
        %v957 = vpack.c.b16 %v747, %v740
        %v958 = vpack.c.b16 %v748, %v741
        %v959 = vpack.c.b16 %v749, %v742
        %v960 = vpack.c.b16 %v750, %v743
        %v961 = vpack.c.b16 %v751, %v744
        %v962 = vpack.c.b16 %v752, %v745
        %v963 = vpack.c.b16 %v760, %v753
        %v964 = vpack.c.b16 %v761, %v754
        %v965 = vpack.c.b16 %v762, %v755
        %v966 = vpack.c.b16 %v763, %v756
        %v967 = vpack.c.b16 %v764, %v757
        %v968 = vpack.c.b16 %v765, %v758
        %v969 = vpack.c.b16 %v766, %v759
        %v970 = vpack.c.b16 %v774, %v767
        %v971 = vpack.c.b16 %v775, %v768
        %v972 = vpack.c.b16 %v776, %v769
        %v973 = vpack.c.b16 %v777, %v770
        %v974 = vpack.c.b16 %v778, %v771
        %v975 = vpack.c.b16 %v779, %v772
        %v976 = vpack.c.b16 %v780, %v773
        %v977 = vpack.c.b16 %v788, %v781
        %v978 = vpack.c.b16 %v789, %v782
        %v979 = vpack.c.b16 %v790, %v783
        %v980 = vpack.c.b16 %v791, %v784
        %v981 = vpack.c.b16 %v792, %v785
        %v982 = vpack.c.b16 %v793, %v786
        %v983 = vpack.c.b16 %v794, %v787
        %v984 = vpack.c.b16 %v802, %v795
        %v985 = vpack.c.b16 %v803, %v796
        %v986 = vpack.c.b16 %v804, %v797
        %v987 = vpack.c.b16 %v805, %v798
        %v988 = vpack.c.b16 %v806, %v799
        %v989 = vpack.c.b16 %v807, %v800
        %v990 = vpack.c.b16 %v808, %v801
        %v991 = vpack.c.b16 %v816, %v809
        %v992 = vpack.c.b16 %v817, %v810
        %v993 = vpack.c.b16 %v818, %v811
        %v994 = vpack.c.b16 %v819, %v812
        %v995 = vpack.c.b16 %v820, %v813
        %v996 = vpack.c.b16 %v821, %v814
        %v997 = vpack.c.b16 %v822, %v815
        %v998 = vpack.c.b16 %v830, %v823
        %v999 = vpack.c.b16 %v831, %v824
        %v1000 = vpack.c.b16 %v832, %v825
        %v1001 = vpack.c.b16 %v833, %v826
        %v1002 = vpack.c.b16 %v834, %v827
        %v1003 = vpack.c.b16 %v835, %v828
        %v1004 = vpack.c.b16 %v836, %v829
        %v1005 = vpack.c.b16 %v844, %v837
        %v1006 = vpack.c.b16 %v845, %v838
        %v1007 = vpack.c.b16 %v846, %v839
        %v1008 = vpack.c.b16 %v847, %v840
        %v1009 = vpack.c.b16 %v848, %v841
        %v1010 = vpack.c.b16 %v849, %v842
        %v1011 = vpack.c.b16 %v850, %v843
        %v1012 = vpack.c.b16 %v858, %v851
        %v1013 = vpack.c.b16 %v859, %v852
        %v1014 = vpack.c.b16 %v860, %v853
        %v1015 = vpack.c.b16 %v861, %v854
        %v1016 = vpack.c.b16 %v862, %v855
        %v1017 = vpack.c.b16 %v863, %v856
        %v1018 = vpack.c.b16 %v864, %v857
        %v1019 = vpack.c.b16 %v872, %v865
        %v1020 = vpack.c.b16 %v873, %v866
        %v1021 = vpack.c.b16 %v874, %v867
        %v1022 = vpack.c.b16 %v875, %v868
        %v1023 = vpack.c.b16 %v876, %v869
        %v1024 = vpack.c.b16 %v877, %v870
        %v1025 = vpack.c.b16 %v878, %v871
        %v1026 = vpack.c.b16 %v886, %v879
        %v1027 = vpack.c.b16 %v887, %v880
        %v1028 = vpack.c.b16 %v888, %v881
        %v1029 = vpack.c.b16 %v889, %v882
        %v1030 = vpack.c.b16 %v890, %v883
        %v1031 = vpack.c.b16 %v891, %v884
        %v1032 = vpack.c.b16 %v892, %v885
        %v1033 = vpack.c.b16 %v900, %v893
        %v1034 = vpack.c.b16 %v901, %v894
        %v1035 = vpack.c.b16 %v902, %v895
        %v1036 = vpack.c.b16 %v903, %v896
        %v1037 = vpack.c.b16 %v904, %v897
        %v1038 = vpack.c.b16 %v905, %v898
        %v1039 = vpack.c.b16 %v906, %v899
        %v1040 = vpack.c.b16 %v914, %v907
        %v1041 = vpack.c.b16 %v915, %v908
        %v1042 = vpack.c.b16 %v916, %v909
        %v1043 = vpack.c.b16 %v917, %v910
        %v1044 = vpack.c.b16 %v918, %v911
        %v1045 = vpack.c.b16 %v919, %v912
        %v1046 = vpack.c.b16 %v920, %v913
        %v1047 = vpack.c.b16 %v928, %v921
        %v1048 = vpack.c.b16 %v929, %v922
        %v1049 = vpack.c.b16 %v930, %v923
        %v1050 = vpack.c.b16 %v931, %v924
        %v1051 = vpack.c.b16 %v932, %v925
        %v1052 = vpack.c.b16 %v933, %v926
        %v1053 = vpack.c.b16 %v934, %v927
        %v1054 = vpack.c.b16 %v942, %v935
        %v1055 = vpack.c.b16 %v943, %v936
        %v1056 = vpack.c.b16 %v944, %v937
        %v1057 = vpack.c.b16 %v945, %v938
        %v1058 = vpack.c.b16 %v946, %v939
        %v1059 = vpack.c.b16 %v947, %v940
        %v1060 = vpack.c.b16 %v948, %v941
        %1173 = vmatprep.subr.bf16.mxu0 %v950
        %1174 = vmatpush1.bf16.msra.mxu0 %v949
        %1175 = vmatprep.subr.bf16.mxu0 %v957
        %1176 = vmatpush1.bf16.msra.mxu0 %v956
        %1177 = vmatprep.subr.bf16.mxu0 %v964
        %1178 = vmatpush1.bf16.msra.mxu0 %v963
        %1179 = vmatprep.subr.bf16.mxu0 %v971
        %1180 = vmatpush1.bf16.msra.mxu0 %v970
        %1181 = vmatprep.subr.bf16.mxu0 %v978
        %1182 = vmatpush1.bf16.msra.mxu0 %v977
        %1183 = vmatprep.subr.bf16.mxu0 %v985
        %1184 = vmatpush1.bf16.msra.mxu0 %v984
        %1185 = vmatprep.subr.bf16.mxu0 %v992
        %1186 = vmatpush1.bf16.msra.mxu0 %v991
        %1187 = vmatprep.subr.bf16.mxu0 %v999
        %1188 = vmatpush1.bf16.msra.mxu0 %v998
        %1189 = vmatprep.subr.bf16.mxu0 %v1006
        %1190 = vmatpush1.bf16.msra.mxu0 %v1005
        %1191 = vmatprep.subr.bf16.mxu0 %v1013
        %1192 = vmatpush1.bf16.msra.mxu0 %v1012
        %1193 = vmatprep.subr.bf16.mxu0 %v1020
        %1194 = vmatpush1.bf16.msra.mxu0 %v1019
        %1195 = vmatprep.subr.bf16.mxu0 %v1027
        %1196 = vmatpush1.bf16.msra.mxu0 %v1026
        %1197 = vmatprep.subr.bf16.mxu0 %v1034
        %1198 = vmatpush1.bf16.msra.mxu0 %v1033
        %1199 = vmatprep.subr.bf16.mxu0 %v1041
        %1200 = vmatpush1.bf16.msra.mxu0 %v1040
        %1201 = vmatprep.subr.bf16.mxu0 %v1048
        %1202 = vmatpush1.bf16.msra.mxu0 %v1047
        %1203 = vmatprep.subr.bf16.mxu0 %v1055
        %1204 = vmatpush1.bf16.msra.mxu0 %v1054
        %1205 = vmatprep.mubr.bf16.mxu0 %v429
        %1206 = vmatmul.mubr.bf16.gmra.mrb[0].mxu0 %v428
        %v1207 = vpop.f32.mrb[0].mxu0
        %v1208 = vadd.f32 %v565, %v1207
        %v1209 = vpop.f32.mrb[0].mxu0
        %v1210 = vadd.f32 %v569, %v1209
        %v1211 = vpop.f32.mrb[0].mxu0
        %v1212 = vadd.f32 %v565, %v1211
        %v1213 = vpop.f32.mrb[0].mxu0
        %v1214 = vadd.f32 %v569, %v1213
        %1215 = vmatprep.mubr.bf16.mxu0 %v431
        %1216 = vmatmul.mubr.bf16.gmra.mrb[0].mxu0 %v430
        %v1217 = vpop.f32.mrb[0].mxu0
        %v1218 = vadd.f32 %v565, %v1217
        %v1219 = vpop.f32.mrb[0].mxu0
        %v1220 = vadd.f32 %v569, %v1219
        %v1221 = vpop.f32.mrb[0].mxu0
        %v1222 = vadd.f32 %v565, %v1221
        %v1223 = vpop.f32.mrb[0].mxu0
        %v1224 = vadd.f32 %v569, %v1223
        %1225 = vdwg.mxu0
        %1226 = vmatprep.subr.bf16.mxu0 %v952
        %1227 = vmatpush1.bf16.msra.mxu0 %v951
        %1228 = vmatprep.subr.bf16.mxu0 %v959
        %1229 = vmatpush1.bf16.msra.mxu0 %v958
        %1230 = vmatprep.subr.bf16.mxu0 %v966
        %1231 = vmatpush1.bf16.msra.mxu0 %v965
        %1232 = vmatprep.subr.bf16.mxu0 %v973
        %1233 = vmatpush1.bf16.msra.mxu0 %v972
        %1234 = vmatprep.subr.bf16.mxu0 %v980
        %1235 = vmatpush1.bf16.msra.mxu0 %v979
        %1236 = vmatprep.subr.bf16.mxu0 %v987
        %1237 = vmatpush1.bf16.msra.mxu0 %v986
        %1238 = vmatprep.subr.bf16.mxu0 %v994
        %1239 = vmatpush1.bf16.msra.mxu0 %v993
        %1240 = vmatprep.subr.bf16.mxu0 %v1001
        %1241 = vmatpush1.bf16.msra.mxu0 %v1000
        %1242 = vmatprep.subr.bf16.mxu0 %v1008
        %1243 = vmatpush1.bf16.msra.mxu0 %v1007
        %1244 = vmatprep.subr.bf16.mxu0 %v1015
        %1245 = vmatpush1.bf16.msra.mxu0 %v1014
        %1246 = vmatprep.subr.bf16.mxu0 %v1022
        %1247 = vmatpush1.bf16.msra.mxu0 %v1021
        %1248 = vmatprep.subr.bf16.mxu0 %v1029
        %1249 = vmatpush1.bf16.msra.mxu0 %v1028
        %1250 = vmatprep.subr.bf16.mxu0 %v1036
        %1251 = vmatpush1.bf16.msra.mxu0 %v1035
        %1252 = vmatprep.subr.bf16.mxu0 %v1043
        %1253 = vmatpush1.bf16.msra.mxu0 %v1042
        %1254 = vmatprep.subr.bf16.mxu0 %v1050
        %1255 = vmatpush1.bf16.msra.mxu0 %v1049
        %1256 = vmatprep.subr.bf16.mxu0 %v1057
        %1257 = vmatpush1.bf16.msra.mxu0 %v1056
        %1258 = vmatprep.mubr.bf16.mxu0 %v429
        %1259 = vmatmul.mubr.bf16.gmra.mrb[0].mxu0 %v428
        %v1260 = vpop.f32.mrb[0].mxu0
        %v1261 = vadd.f32 %v573, %v1260
        %v1262 = vpop.f32.mrb[0].mxu0
        %v1263 = vadd.f32 %v577, %v1262
        %v1264 = vpop.f32.mrb[0].mxu0
        %v1265 = vadd.f32 %v573, %v1264
        %v1266 = vpop.f32.mrb[0].mxu0
        %v1267 = vadd.f32 %v577, %v1266
        %1268 = vmatprep.mubr.bf16.mxu0 %v431
        %1269 = vmatmul.mubr.bf16.gmra.mrb[0].mxu0 %v430
        %v1270 = vpop.f32.mrb[0].mxu0
        %v1271 = vadd.f32 %v573, %v1270
        %v1272 = vpop.f32.mrb[0].mxu0
        %v1273 = vadd.f32 %v577, %v1272
        %v1274 = vpop.f32.mrb[0].mxu0
        %v1275 = vadd.f32 %v573, %v1274
        %v1276 = vpop.f32.mrb[0].mxu0
        %v1277 = vadd.f32 %v577, %v1276
        %1278 = vdwg.mxu0
        %1279 = vmatprep.subr.bf16.mxu0 %v954
        %1280 = vmatpush1.bf16.msra.mxu0 %v953
        %1281 = vmatprep.subr.bf16.mxu0 %v961
        %1282 = vmatpush1.bf16.msra.mxu0 %v960
        %1283 = vmatprep.subr.bf16.mxu0 %v968
        %1284 = vmatpush1.bf16.msra.mxu0 %v967
        %1285 = vmatprep.subr.bf16.mxu0 %v975
        %1286 = vmatpush1.bf16.msra.mxu0 %v974
        %1287 = vmatprep.subr.bf16.mxu0 %v982
        %1288 = vmatpush1.bf16.msra.mxu0 %v981
        %1289 = vmatprep.subr.bf16.mxu0 %v989
        %1290 = vmatpush1.bf16.msra.mxu0 %v988
        %1291 = vmatprep.subr.bf16.mxu0 %v996
        %1292 = vmatpush1.bf16.msra.mxu0 %v995
        %1293 = vmatprep.subr.bf16.mxu0 %v1003
        %1294 = vmatpush1.bf16.msra.mxu0 %v1002
        %1295 = vmatprep.subr.bf16.mxu0 %v1010
        %1296 = vmatpush1.bf16.msra.mxu0 %v1009
        %1297 = vmatprep.subr.bf16.mxu0 %v1017
        %1298 = vmatpush1.bf16.msra.mxu0 %v1016
        %1299 = vmatprep.subr.bf16.mxu0 %v1024
        %1300 = vmatpush1.bf16.msra.mxu0 %v1023
        %1301 = vmatprep.subr.bf16.mxu0 %v1031
        %1302 = vmatpush1.bf16.msra.mxu0 %v1030
        %1303 = vmatprep.subr.bf16.mxu0 %v1038
        %1304 = vmatpush1.bf16.msra.mxu0 %v1037
        %1305 = vmatprep.subr.bf16.mxu0 %v1045
        %1306 = vmatpush1.bf16.msra.mxu0 %v1044
        %1307 = vmatprep.subr.bf16.mxu0 %v1052
        %1308 = vmatpush1.bf16.msra.mxu0 %v1051
        %1309 = vmatprep.subr.bf16.mxu0 %v1059
        %1310 = vmatpush1.bf16.msra.mxu0 %v1058
        %1311 = vmatprep.mubr.bf16.mxu0 %v429
        %1312 = vmatmul.mubr.bf16.gmra.mrb[0].mxu0 %v428
        %v1313 = vpop.f32.mrb[0].mxu0
        %v1314 = vadd.f32 %v581, %v1313
        %v1315 = vpop.f32.mrb[0].mxu0
        %v1316 = vadd.f32 %v585, %v1315
        %v1317 = vpop.f32.mrb[0].mxu0
        %v1318 = vadd.f32 %v581, %v1317
        %v1319 = vpop.f32.mrb[0].mxu0
        %v1320 = vadd.f32 %v585, %v1319
        %1321 = vmatprep.mubr.bf16.mxu0 %v431
        %1322 = vmatmul.mubr.bf16.gmra.mrb[0].mxu0 %v430
        %v1323 = vpop.f32.mrb[0].mxu0
        %v1324 = vadd.f32 %v581, %v1323
        %v1325 = vpop.f32.mrb[0].mxu0
        %v1326 = vadd.f32 %v585, %v1325
        %v1327 = vpop.f32.mrb[0].mxu0
        %v1328 = vadd.f32 %v581, %v1327
        %v1329 = vpop.f32.mrb[0].mxu0
        %v1330 = vadd.f32 %v585, %v1329
        %1331 = vdwg.mxu0
        %1332 = vmatprep.subr.bf16.mxu0 0
        %1333 = vmatpush1.bf16.msra.mxu0 %v955
        %1334 = vmatprep.subr.bf16.mxu0 0
        %1335 = vmatpush1.bf16.msra.mxu0 %v962
        %1336 = vmatprep.subr.bf16.mxu0 0
        %1337 = vmatpush1.bf16.msra.mxu0 %v969
        %1338 = vmatprep.subr.bf16.mxu0 0
        %1339 = vmatpush1.bf16.msra.mxu0 %v976
        %1340 = vmatprep.subr.bf16.mxu0 0
        %1341 = vmatpush1.bf16.msra.mxu0 %v983
        %1342 = vmatprep.subr.bf16.mxu0 0
        %1343 = vmatpush1.bf16.msra.mxu0 %v990
        %1344 = vmatprep.subr.bf16.mxu0 0
        %1345 = vmatpush1.bf16.msra.mxu0 %v997
        %1346 = vmatprep.subr.bf16.mxu0 0
        %1347 = vmatpush1.bf16.msra.mxu0 %v1004
        %1348 = vmatprep.subr.bf16.mxu0 0
        %1349 = vmatpush1.bf16.msra.mxu0 %v1011
        %1350 = vmatprep.subr.bf16.mxu0 0
        %1351 = vmatpush1.bf16.msra.mxu0 %v1018
        %1352 = vmatprep.subr.bf16.mxu0 0
        %1353 = vmatpush1.bf16.msra.mxu0 %v1025
        %1354 = vmatprep.subr.bf16.mxu0 0
        %1355 = vmatpush1.bf16.msra.mxu0 %v1032
        %1356 = vmatprep.subr.bf16.mxu0 0
        %1357 = vmatpush1.bf16.msra.mxu0 %v1039
        %1358 = vmatprep.subr.bf16.mxu0 0
        %1359 = vmatpush1.bf16.msra.mxu0 %v1046
        %1360 = vmatprep.subr.bf16.mxu0 0
        %1361 = vmatpush1.bf16.msra.mxu0 %v1053
        %1362 = vmatprep.subr.bf16.mxu0 0
        %1363 = vmatpush1.bf16.msra.mxu0 %v1060
        %1364 = vmatprep.mubr.bf16.mxu0 %v429
        %1365 = vmatmul.mubr.bf16.gmra.mrb[0].mxu0 %v428
        %v1366 = vpop.f32.mrb[0].mxu0
        %v1367 = vadd.f32 %v589, %v1366
        %v1368 = vpop.f32.mrb[0].mxu0
        %v1369 = vpop.f32.mrb[0].mxu0
        %v1370 = vadd.f32 %v589, %v1369
        %v1371 = vpop.f32.mrb[0].mxu0
        %1372 = vmatprep.mubr.bf16.mxu0 %v431
        %1373 = vmatmul.mubr.bf16.gmra.mrb[0].mxu0 %v430
        %v1374 = vpop.f32.mrb[0].mxu0
        %v1375 = vadd.f32 %v589, %v1374
        %v1376 = vpop.f32.mrb[0].mxu0
        %v1377 = vpop.f32.mrb[0].mxu0
        %v1378 = vadd.f32 %v589, %v1377
        %v1379 = vpop.f32.mrb[0].mxu0
        %1380 = vdwg.mxu0
        %v1381 = vtanh.pop %v1208
        %v1382 = vtanh.pop %v1210
        %v1383 = vtanh.pop %v1261
        %v1384 = vtanh.pop %v1263
        %v1385 = vtanh.pop %v1314
        %v1386 = vtanh.pop %v1316
        %v1387 = vtanh.pop %v1367
        %v1388 = vtanh.pop %v1212
        %v1389 = vtanh.pop %v1214
        %v1390 = vtanh.pop %v1265
        %v1391 = vtanh.pop %v1267
        %v1392 = vtanh.pop %v1318
        %v1393 = vtanh.pop %v1320
        %v1394 = vtanh.pop %v1370
        %v1395 = vtanh.pop %v1218
        %v1396 = vtanh.pop %v1220
        %v1397 = vtanh.pop %v1271
        %v1398 = vtanh.pop %v1273
        %v1399 = vtanh.pop %v1324
        %v1400 = vtanh.pop %v1326
        %v1401 = vtanh.pop %v1375
        %v1402 = vtanh.pop %v1222
        %v1403 = vtanh.pop %v1224
        %v1404 = vtanh.pop %v1275
        %v1405 = vtanh.pop %v1277
        %v1406 = vtanh.pop %v1328
        %v1407 = vtanh.pop %v1330
        %v1408 = vtanh.pop %v1378
        %v1409 = vpack.c.bf16 %v1388, %v1381
        %v1410 = vpack.c.bf16 %v1389, %v1382
        %v1411 = vpack.c.bf16 %v1390, %v1383
        %v1412 = vpack.c.bf16 %v1391, %v1384
        %v1413 = vpack.c.bf16 %v1392, %v1385
        %v1414 = vpack.c.bf16 %v1393, %v1386
        %v1415 = vpack.c.bf16 %v1394, %v1387
        %v1416 = vpack.c.bf16 %v1402, %v1395
        %v1417 = vpack.c.bf16 %v1403, %v1396
        %v1418 = vpack.c.bf16 %v1404, %v1397
        %v1419 = vpack.c.bf16 %v1405, %v1398
        %v1420 = vpack.c.bf16 %v1406, %v1399
        %v1421 = vpack.c.bf16 %v1407, %v1400
        %v1422 = vpack.c.bf16 %v1408, %v1401
        %v1437 = vunpack.c.l.b16 %v1409
        %v1438 = vunpack.c.l.b16 %v1410
        %v1439 = vunpack.c.l.b16 %v1411
        %v1440 = vunpack.c.l.b16 %v1412
        %v1441 = vunpack.c.l.b16 %v1413
        %v1442 = vunpack.c.l.b16 %v1414
        %v1443 = vunpack.c.l.b16 %v1415
        %v1444 = vunpack.c.h.b16 %v1409
        %v1445 = vunpack.c.h.b16 %v1410
        %v1446 = vunpack.c.h.b16 %v1411
        %v1447 = vunpack.c.h.b16 %v1412
        %v1448 = vunpack.c.h.b16 %v1413
        %v1449 = vunpack.c.h.b16 %v1414
        %v1450 = vunpack.c.h.b16 %v1415
        %v1451 = vunpack.c.l.b16 %v1416
        %v1452 = vunpack.c.l.b16 %v1417
        %v1453 = vunpack.c.l.b16 %v1418
        %v1454 = vunpack.c.l.b16 %v1419
        %v1455 = vunpack.c.l.b16 %v1420
        %v1456 = vunpack.c.l.b16 %v1421
        %v1457 = vunpack.c.l.b16 %v1422
        %v1458 = vunpack.c.h.b16 %v1416
        %v1459 = vunpack.c.h.b16 %v1417
        %v1460 = vunpack.c.h.b16 %v1418
        %v1461 = vunpack.c.h.b16 %v1419
        %v1462 = vunpack.c.h.b16 %v1420
        %v1463 = vunpack.c.h.b16 %v1421
        %v1464 = vunpack.c.h.b16 %v1422
        %v1465 = vpack.c.b16 %v1438, %v1437
        %v1466 = vpack.c.b16 %v1440, %v1439
        %v1467 = vpack.c.b16 %v1442, %v1441
        %v1468 = vpack.c.b16 %v1443, %v1443
        %v1469 = vpack.c.b16 %v1445, %v1444
        %v1470 = vpack.c.b16 %v1447, %v1446
        %v1471 = vpack.c.b16 %v1449, %v1448
        %v1472 = vpack.c.b16 %v1450, %v1450
        %v1473 = vpack.c.b16 %v1452, %v1451
        %v1474 = vpack.c.b16 %v1454, %v1453
        %v1475 = vpack.c.b16 %v1456, %v1455
        %v1476 = vpack.c.b16 %v1457, %v1457
        %v1477 = vpack.c.b16 %v1459, %v1458
        %v1478 = vpack.c.b16 %v1461, %v1460
        %v1479 = vpack.c.b16 %v1463, %v1462
        %v1480 = vpack.c.b16 %v1464, %v1464
        %1497 = vst [vmem:[%s218] sm:$0xff] %v1465
        %1498 = vst [vmem:[%s218 + $0x8] sm:$0xff] %v1466
        %1499 = vst [vmem:[%s218 + $0x10] sm:$0xff] %v1467
        %vm1500 = vcmask 125952
        %1501 = vst.msk [vmem:[%s218 + $0x18] sm:$0xf] %vm1500, %v1468
        %1502 = vst [vmem:[%s218 + $0x1c] sm:$0xff] %v1469
        %1503 = vst [vmem:[%s218 + $0x24] sm:$0xff] %v1470
        %1504 = vst [vmem:[%s218 + $0x2c] sm:$0xff] %v1471
        %1505 = vst.msk [vmem:[%s218 + $0x34] sm:$0xf] %vm1500, %v1472
        %1506 = vst [vmem:[%s218 + $0x38] sm:$0xff] %v1473
        %1507 = vst [vmem:[%s218 + $0x40] sm:$0xff] %v1474
        %1508 = vst [vmem:[%s218 + $0x48] sm:$0xff] %v1475
        %1509 = vst.msk [vmem:[%s218 + $0x50] sm:$0xf] %vm1500, %v1476
        %1510 = vst [vmem:[%s218 + $0x54] sm:$0xff] %v1477
        %1511 = vst [vmem:[%s218 + $0x5c] sm:$0xff] %v1478
        %1512 = vst [vmem:[%s218 + $0x64] sm:$0xff] %v1479
        %1513 = vst.msk [vmem:[%s218 + $0x6c] sm:$0xf] %vm1500, %v1480
        %s1514 = sand.u32 %s137, 1
        %s1515 = scalar_lea.sflag [#allocation3], %s1514
        %s1516 = sand.u32 %s137, 1
        %s1517 = smul.addr %s1516, 112
        %s1518 = scalar_lea.vmem [#allocation2], %s1517
        // Predicated region
        $region41: #{tpu_custom_call.1} parent=39 // pred_check
          %p1519 = pneg %p147
        $region42: #{tpu_custom_call.1} parent=39 // pred_check_branch
          %1521 = sbr.rel (%p1519) target = $region44
        $region43: #{tpu_custom_call.1} parent=39 // pred_region
          %s1522 = smul.u32 4, %s19
          %s1524 = ssub.s32 1792, 1792
          %1525 = vsyncadd %s1515, %s1524
          %s1526 = smul.addr %s1522, 7
          %s1527 = smul.addr %s1526, 64
          %s1528 = scalar_lea.hbm %s5, %s1527
          %s1529 = sshll.u32 %s1518, 4
          %s1530 = int_to_ptr.vmem [resolvable:$true] %s1529
          %1535 = dma.vmem_to_hbm [thread:$0]  %s1530, 1792, %s1528, %s1515, 448, 448, 28
        $region44: #{tpu_custom_call.1} parent=39 // pred_fallthru
          _
      $region40: #{tpu_custom_call.1} parent=5 // pred_fallthru
        _
      %p1536 = scmp.le.s32.totalorder 2, %s14
      // Predicated region
      $region45: #{tpu_custom_call.1} parent=5 // pred_check
        %p1537 = pneg %p1536
      $region46: #{tpu_custom_call.1} parent=5 // pred_check_branch
        %1539 = sbr.rel (%p1537) target = $region48
      $region47: #{tpu_custom_call.1} parent=5 // pred_region
        %s1540 = ssub.s32 %s14, 2
        // Predicated region
        $region49: #{tpu_custom_call.1} parent=47 // pred_check
          %p1541 = pneg %p153
        $region50: #{tpu_custom_call.1} parent=47 // pred_check_branch
          %1543 = sbr.rel (%p1541) target = $region52
        $region51: #{tpu_custom_call.1} parent=47 // pred_region
          %s1544 = sand.u32 %s138, 1
          %s1545 = scalar_lea.sflag [#allocation3], %s1544
          %s1546 = sand.u32 %s138, 1
          %s1547 = smul.addr %s1546, 112
          %s1548 = scalar_lea.vmem [#allocation2], %s1547
          %1549 = dma.done %s1545, 1792
        $region52: #{tpu_custom_call.1} parent=47 // pred_fallthru
          _
      $region48: #{tpu_custom_call.1} parent=5 // pred_fallthru
        _
    $region6: #{tpu_custom_call.1} parent=1 // loop_footer
      %s18 = sadd.s32 1, %s14
    $region7: #{tpu_custom_call.1} parent=1 // loop_footer_branch
      %13 = sbr.rel target = $region3
    $region8: #{tpu_custom_call.1} parent=1 // loop_exit
      _
    %1550 = vsyncpa [#allocation3], 1
    %s1551 = scalar_lea.sflag [#allocation3], 1
    %1552 = vsyncpa %s1551, 1

</llo_original>
